<compile_context>
chip_gen: v5e
topology: v5e:2x2
jax: 0.10.0
libtpu: 0.0.40
codegen_flags: <defaults>
</compile_context>

<pallas_src>
import functools

import jax
import jax.numpy as jnp
from jax.experimental import pallas as pl
from jax.experimental.pallas import tpu as pltpu


def lrn_kernel(x1_ref, x2_ref, w13_ref, b13_ref, w2_ref, b2_ref,
               pooled_ref, sse_ref, max_acc, sse_acc, *, cp, bb):
    """One grid step == one (batch-block, HW-tile) pair.

    x1_ref / x2_ref : (bb, C, tile_hw) tiles of the (B, C, HW) inputs
    w13_ref         : (cp + C, C) fused [conv1(padded); conv3] weights
    b13_ref         : (cp + C, 1) fused biases (f32)
    w2_ref / b2_ref : (cp, C) / (cp, 1) conv2 weight / bias
    pooled_ref      : (bb, 1, C)  lane-dense pooled output (resident over t)
    sse_ref         : (1, 1, 1)   per-batch-block SSE output
    max_acc         : (bb, C, tile_hw) f32 running elementwise max of y3
    sse_acc         : (cp, tile_hw)    f32 running elementwise sum of diff^2
    """
    t = pl.program_id(1)
    n_t = pl.num_programs(1)

    @pl.when(t == 0)
    def _():
        # ReLU output is >= 0, so a zero init is equivalent to -inf for max.
        max_acc[...] = jnp.zeros_like(max_acc)
        sse_acc[...] = jnp.zeros_like(sse_acc)

    w13 = w13_ref[...]
    b13 = b13_ref[...]
    w2 = w2_ref[...]
    b2 = b2_ref[...]

    # Static unroll over the (small) number of batch rows in this block:
    # each row is a clean 2-D matmul with HW on the lane axis (no relayout).
    for i in range(bb):
        x1 = x1_ref[i]                                   # (C, tile_hw)
        x2 = x2_ref[i]                                   # (C, tile_hw)

        # Fused conv1 + conv3 on the x1 path: one MXU call, aligned row split.
        y13 = jnp.maximum(
            jnp.dot(w13, x1, preferred_element_type=jnp.float32) + b13, 0.0)
        y1 = y13[:cp]                                    # conv1(x1)+ReLU (padded rows = 0)
        y3 = y13[cp:]                                    # conv3(x1)+ReLU

        # conv2 on the x2 path.
        y2 = jnp.maximum(
            jnp.dot(w2, x2, preferred_element_type=jnp.float32) + b2, 0.0)

        d = y1 - y2
        # Elementwise accumulators (VPU only) -- no per-tile XLU reductions,
        # no per-tile masked scalar stores.
        max_acc[i] = jnp.maximum(max_acc[i], y3)
        sse_acc[...] = sse_acc[...] + d * d

    @pl.when(t == n_t - 1)
    def _():
        # One lane reduction + lane-dense store per batch block.
        pooled_ref[...] = jnp.max(max_acc[...], axis=2)[:, None, :]   # (bb,1,C)
        sse_ref[...] = jnp.sum(sse_acc[...]).reshape(1, 1, 1)


def _choose_tiling(B, C, HW, bytes_per_elem, target_step_bytes):
    """Pick (batch rows per block, HW tile) so each step streams a fat block.

    tile_hw is the largest multiple of 128 that divides HW and keeps a single
    input block under `target_step_bytes` (full HW if HW is not a multiple of
    128 or already small). When the whole HW fits in one tile, batch rows are
    folded into the block instead -- but at least 2 batch blocks are kept when
    B >= 2 so the parallel grid axis can shard across TensorCores.
    """
    if HW % 128 != 0 or C * HW * bytes_per_elem <= target_step_bytes:
        tile_hw = HW
    else:
        lane_budget = max(128, target_step_bytes // (C * bytes_per_elem))
        tile_hw = 128
        t = 128
        while t <= min(HW, lane_budget):
            if HW % t == 0:
                tile_hw = t
            t += 128

    bb = 1
    if tile_hw == HW:
        for cand in range(1, B + 1):
            if B % cand != 0:
                continue
            if cand * C * HW * bytes_per_elem > target_step_bytes:
                break
            if B // cand >= 2 or B == 1:
                bb = cand
    return bb, tile_hw


@functools.partial(
    jax.jit,
    static_argnames=("compute_dtype", "per_input_step_bytes", "core_parallel_batch"))
def lrn_forward(x1, x2, params, *, compute_dtype=jnp.bfloat16,
                per_input_step_bytes=1 << 20, core_parallel_batch=False):
    B, C, H, W = x1.shape
    HW = H * W

    in_itemsize = jnp.dtype(compute_dtype).itemsize
    bb, tile_hw = _choose_tiling(B, C, HW, in_itemsize, per_input_step_bytes)
    n_bb = B // bb
    n_t = HW // tile_hw

    # NCHW -> (B, C, HW): pure reshape (no transpose pass over HBM), then cast
    # to the streaming dtype (bf16 by default -> half the HBM read bytes).
    x1r = x1.reshape(B, C, HW).astype(compute_dtype)
    x2r = x2.reshape(B, C, HW).astype(compute_dtype)

    # Pad conv1/conv2 out-channels to a multiple of 8 so the fused-weight row
    # split lands on an f32 sublane-tile boundary. Padded rows have zero
    # weight & bias -> ReLU(0) = 0 on both branches -> zero MSE contribution.
    Cp = ((C + 7) // 8) * 8
    pad = Cp - C
    w1 = jnp.pad(params["w1"], ((0, pad), (0, 0)))
    b1 = jnp.pad(params["b1"], ((0, pad),))
    w2p = jnp.pad(params["w2"], ((0, pad), (0, 0)))
    b2p = jnp.pad(params["b2"], ((0, pad),))

    # Fuse conv1 and conv3 (both consume x1): [w1_pad; w3] -> (Cp + C, C).
    w13 = jnp.concatenate([w1, params["w3"]], axis=0).astype(compute_dtype)
    b13 = jnp.concatenate([b1, params["b3"]], axis=0).reshape(Cp + C, 1)
    b13 = b13.astype(jnp.float32)
    w2 = w2p.astype(compute_dtype)
    b2 = b2p.reshape(Cp, 1).astype(jnp.float32)

    in_specs = [
        pl.BlockSpec((bb, C, tile_hw), lambda b, t: (b, 0, t)),   # x1
        pl.BlockSpec((bb, C, tile_hw), lambda b, t: (b, 0, t)),   # x2
        pl.BlockSpec((Cp + C, C), lambda b, t: (0, 0)),           # w13 (grid-invariant)
        pl.BlockSpec((Cp + C, 1), lambda b, t: (0, 0)),           # b13
        pl.BlockSpec((Cp, C), lambda b, t: (0, 0)),               # w2
        pl.BlockSpec((Cp, 1), lambda b, t: (0, 0)),               # b2
    ]
    out_specs = [
        pl.BlockSpec((bb, 1, C), lambda b, t: (b, 0, 0)),   # pooled, lane-dense C
        pl.BlockSpec((1, 1, 1), lambda b, t: (b, 0, 0)),    # per-batch-block SSE
    ]
    out_shape = (
        jax.ShapeDtypeStruct((B, 1, C), jnp.float32),
        jax.ShapeDtypeStruct((n_bb, 1, 1), jnp.float32),
    )
    scratch_shapes = [
        pltpu.VMEM((bb, C, tile_hw), jnp.float32),   # running max of y3
        pltpu.VMEM((Cp, tile_hw), jnp.float32),      # running sum of diff^2
    ]

    batch_sem = pltpu.CORE_PARALLEL if core_parallel_batch else "parallel"

    pooled, sse = pl.pallas_call(
        functools.partial(lrn_kernel, cp=Cp, bb=bb),
        out_shape=out_shape,
        grid_spec=pltpu.PrefetchScalarGridSpec(
            num_scalar_prefetch=0,
            grid=(n_bb, n_t),              # batch blocks (parallel), HW tiles (reduction)
            in_specs=in_specs,
            out_specs=out_specs,
            scratch_shapes=scratch_shapes,
        ),
        compiler_params=pltpu.CompilerParams(
            dimension_semantics=(batch_sem, "arbitrary"),
            # 32 MiB: plenty for the ~1 MiB/input blocks + f32 intermediates,
            # and leaves headroom on v7x's 64 MiB physical VMEM per core.
            vmem_limit_bytes=32 * 1024 * 1024,
        ),
    )(x1r, x2r, w13, b13, w2, b2)

    # Tiny epilogue in the wrapper: M=1-per-row linear + final mean (degenerate
    # sizes, not worth a kernel).
    pooled = pooled.reshape(B, C)
    mlp_out = pooled @ params["wm"].T + params["bm"]
    mse = jnp.sum(sse) / jnp.float32(B * C * HW)
    return mlp_out, mse


def lrn_reference(x1, x2, params):
    """Pure-JAX reference mirroring the PyTorch module (NCHW, f32)."""
    def conv1x1_relu(x, w, b):
        y = jnp.einsum("bchw,oc->bohw", x, w) + b[None, :, None, None]
        return jnp.maximum(y, 0.0)

    F1 = conv1x1_relu(x1, params["w1"], params["b1"])
    F2 = conv1x1_relu(x2, params["w2"], params["b2"])
    y3 = conv1x1_relu(x1, params["w3"], params["b3"])
    pooled = jnp.max(y3, axis=(2, 3))                         # (B, C)
    mlp_out = pooled @ params["wm"].T + params["bm"]
    mse = jnp.mean((F1 - F2) ** 2)
    return mlp_out, mse


def init_params(key, input_channel, class_num):
    """Deterministic PyTorch-style uniform(-1/sqrt(fan_in), 1/sqrt(fan_in)) init."""
    ks = jax.random.split(key, 8)

    def u(k, shape, fan_in):
        bound = 1.0 / float(fan_in) ** 0.5
        return jax.random.uniform(k, shape, jnp.float32, -bound, bound)

    C, NC = input_channel, class_num
    return {
        "w1": u(ks[0], (C, C), C), "b1": u(ks[1], (C,), C),   # conv1 (1x1)
        "w2": u(ks[2], (C, C), C), "b2": u(ks[3], (C,), C),   # conv2 (1x1)
        "w3": u(ks[4], (C, C), C), "b3": u(ks[5], (C,), C),   # weight-branch conv
        "wm": u(ks[6], (NC, C), C), "bm": u(ks[7], (NC,), C), # nn.Linear(C, NC)
    }


if __name__ == "__main__":
    B, C, H, W = 2, 8, 16, 16
    CLASS_NUM = 6

    key = jax.random.PRNGKey(0)
    kp, kx1, kx2 = jax.random.split(key, 3)
    params = init_params(kp, C, CLASS_NUM)
    x1 = jax.random.normal(kx1, (B, C, H, W), jnp.float32)
    x2 = jax.random.normal(kx2, (B, C, H, W), jnp.float32)

    mlp_ref, mse_ref = lrn_reference(x1, x2, params)

    # f32 path: bit-for-bit comparable to the reference (tight tolerance).
    mlp_f32, mse_f32 = lrn_forward(x1, x2, params, compute_dtype=jnp.float32)
    jax.block_until_ready((mlp_f32, mse_f32))
    assert mlp_f32.shape == (B, CLASS_NUM)
    assert jnp.allclose(mlp_f32, mlp_ref, rtol=2e-3, atol=2e-3)
    assert jnp.allclose(mse_f32, mse_ref, rtol=2e-3, atol=2e-3)

    # Default bf16 streaming path (half the HBM bytes); bf16-appropriate tol.
    mlp_bf, mse_bf = lrn_forward(x1, x2, params)
    jax.block_until_ready((mlp_bf, mse_bf))
    assert mlp_bf.shape == (B, CLASS_NUM)
    assert jnp.allclose(mlp_bf, mlp_ref, rtol=2e-2, atol=2e-2)
    assert jnp.allclose(mse_bf, mse_ref, rtol=2e-2, atol=2e-2)

    print("KERNEL_OK")
</pallas_src>

<mosaic_0001>
module attributes {stable_mosaic.version = 11 : i64} {
  func.func @lrn_kernel(%arg0: i32, %arg1: i32, %arg2: memref<1x8x256xf32, #tpu.memory_space<vmem>>, %arg3: memref<1x8x256xf32, #tpu.memory_space<vmem>>, %arg4: memref<16x8xf32, #tpu.memory_space<vmem>>, %arg5: memref<16x1xf32, #tpu.memory_space<vmem>>, %arg6: memref<8x8xf32, #tpu.memory_space<vmem>>, %arg7: memref<8x1xf32, #tpu.memory_space<vmem>>, %arg8: memref<1x1x8xf32, #tpu.memory_space<vmem>>, %arg9: memref<1x1x1xf32, #tpu.memory_space<vmem>>, %arg10: memref<1x8x256xf32, #tpu.memory_space<vmem>>, %arg11: memref<8x256xf32, #tpu.memory_space<vmem>>) attributes {dimension_semantics = [#tpu.dimension_semantics<parallel>, #tpu.dimension_semantics<arbitrary>], iteration_bounds = array<i64: 2, 1>, scalar_prefetch = 0 : i64, scratch_operands = 2 : i64, tpu.core_type = #tpu.core_type<tc>, window_params = [{transform_indices = @transform_0, window_bounds = array<i64: 1, 8, 256>}, {transform_indices = @transform_1, window_bounds = array<i64: 1, 8, 256>}, {pipeline_mode = #tpu.pipeline_mode<synchronous>, transform_indices = @transform_2, window_bounds = array<i64: 16, 8>}, {pipeline_mode = #tpu.pipeline_mode<synchronous>, transform_indices = @transform_3, window_bounds = array<i64: 16, 1>}, {pipeline_mode = #tpu.pipeline_mode<synchronous>, transform_indices = @transform_4, window_bounds = array<i64: 8, 8>}, {pipeline_mode = #tpu.pipeline_mode<synchronous>, transform_indices = @transform_5, window_bounds = array<i64: 8, 1>}, {transform_indices = @transform_6, window_bounds = array<i64: 1, 1, 8>}, {transform_indices = @transform_7, window_bounds = array<i64: 1, 1, 1>}]} {
    %c0_i32 = arith.constant 0 : i32
    %0 = arith.cmpi eq, %arg1, %c0_i32 : i32
    %1 = arith.extui %0 : i1 to i32
    %c0_i32_0 = arith.constant 0 : i32
    %2 = arith.cmpi ne, %1, %c0_i32_0 : i32
    scf.if %2 {
      %cst_29 = arith.constant 0.000000e+00 : f32
      %37 = vector.broadcast %cst_29 : f32 to vector<1x8x256xf32>
      %c0_30 = arith.constant 0 : index
      %c0_31 = arith.constant 0 : index
      %c0_32 = arith.constant 0 : index
      %38 = vector.load %arg10[%c0_30, %c0_31, %c0_32] : memref<1x8x256xf32, #tpu.memory_space<vmem>>, vector<1x8x256xf32>
      tpu.vector_store %arg10[%c0_30, %c0_31, %c0_32], %37 {strides = array<i32>} : memref<1x8x256xf32, #tpu.memory_space<vmem>>, vector<1x8x256xf32>,
      %cst_33 = arith.constant 0.000000e+00 : f32
      %39 = vector.broadcast %cst_33 : f32 to vector<8x256xf32>
      %c0_34 = arith.constant 0 : index
      %c0_35 = arith.constant 0 : index
      %40 = vector.load %arg11[%c0_34, %c0_35] : memref<8x256xf32, #tpu.memory_space<vmem>>, vector<8x256xf32>
      tpu.vector_store %arg11[%c0_34, %c0_35], %39 {strides = array<i32>} : memref<8x256xf32, #tpu.memory_space<vmem>>, vector<8x256xf32>,
    } else {
    }
    %c0 = arith.constant 0 : index
    %c0_1 = arith.constant 0 : index
    %3 = vector.load %arg4[%c0, %c0_1] : memref<16x8xf32, #tpu.memory_space<vmem>>, vector<16x8xf32>
    %c0_2 = arith.constant 0 : index
    %c0_3 = arith.constant 0 : index
    %4 = vector.load %arg5[%c0_2, %c0_3] : memref<16x1xf32, #tpu.memory_space<vmem>>, vector<16x1xf32>
    %c0_4 = arith.constant 0 : index
    %c0_5 = arith.constant 0 : index
    %5 = vector.load %arg6[%c0_4, %c0_5] : memref<8x8xf32, #tpu.memory_space<vmem>>, vector<8x8xf32>
    %c0_6 = arith.constant 0 : index
    %c0_7 = arith.constant 0 : index
    %6 = vector.load %arg7[%c0_6, %c0_7] : memref<8x1xf32, #tpu.memory_space<vmem>>, vector<8x1xf32>
    %c0_8 = arith.constant 0 : index
    %c0_9 = arith.constant 0 : index
    %c0_10 = arith.constant 0 : index
    %7 = vector.load %arg2[%c0_8, %c0_9, %c0_10] : memref<1x8x256xf32, #tpu.memory_space<vmem>>, vector<1x8x256xf32>
    %8 = vector.shape_cast %7 : vector<1x8x256xf32> to vector<8x256xf32>
    %c0_11 = arith.constant 0 : index
    %c0_12 = arith.constant 0 : index
    %c0_13 = arith.constant 0 : index
    %9 = vector.load %arg3[%c0_11, %c0_12, %c0_13] : memref<1x8x256xf32, #tpu.memory_space<vmem>>, vector<1x8x256xf32>
    %10 = vector.shape_cast %9 : vector<1x8x256xf32> to vector<8x256xf32>
    %cst = arith.constant dense<0.000000e+00> : vector<16x256xf32>
    %11 = tpu.matmul %3, %8, %cst {dimension_numbers = #tpu.dot_dimension_numbers<[1], [0], [0], [1], [0, 0, 1, 1], [], []>} : vector<16x8xf32>, vector<8x256xf32>, vector<16x256xf32> -> vector<16x256xf32>
    %12 = vector.broadcast %4 : vector<16x1xf32> to vector<16x256xf32>
    %13 = arith.addf %11, %12 : vector<16x256xf32>
    %cst_14 = arith.constant 0.000000e+00 : f32
    %14 = vector.broadcast %cst_14 : f32 to vector<16x256xf32>
    %15 = arith.maximumf %13, %14 : vector<16x256xf32>
    %16 = vector.extract_strided_slice %15 {offsets = [0, 0], sizes = [8, 256], strides = [1, 1]} : vector<16x256xf32> to vector<8x256xf32>
    %17 = vector.extract_strided_slice %15 {offsets = [8, 0], sizes = [8, 256], strides = [1, 1]} : vector<16x256xf32> to vector<8x256xf32>
    %cst_15 = arith.constant dense<0.000000e+00> : vector<8x256xf32>
    %18 = tpu.matmul %5, %10, %cst_15 {dimension_numbers = #tpu.dot_dimension_numbers<[1], [0], [0], [1], [0, 0, 1, 1], [], []>} : vector<8x8xf32>, vector<8x256xf32>, vector<8x256xf32> -> vector<8x256xf32>
    %19 = vector.broadcast %6 : vector<8x1xf32> to vector<8x256xf32>
    %20 = arith.addf %18, %19 : vector<8x256xf32>
    %cst_16 = arith.constant 0.000000e+00 : f32
    %21 = vector.broadcast %cst_16 : f32 to vector<8x256xf32>
    %22 = arith.maximumf %20, %21 : vector<8x256xf32>
    %23 = arith.subf %16, %22 : vector<8x256xf32>
    %c0_17 = arith.constant 0 : index
    %c0_18 = arith.constant 0 : index
    %c0_19 = arith.constant 0 : index
    %24 = vector.load %arg10[%c0_17, %c0_18, %c0_19] : memref<1x8x256xf32, #tpu.memory_space<vmem>>, vector<1x8x256xf32>
    %25 = vector.shape_cast %24 : vector<1x8x256xf32> to vector<8x256xf32>
    %26 = arith.maximumf %25, %17 : vector<8x256xf32>
    %c0_20 = arith.constant 0 : index
    %c0_21 = arith.constant 0 : index
    %c0_22 = arith.constant 0 : index
    %27 = vector.load %arg10[%c0_20, %c0_21, %c0_22] : memref<1x8x256xf32, #tpu.memory_space<vmem>>, vector<1x8x256xf32>
    %28 = vector.shape_cast %27 : vector<1x8x256xf32> to vector<8x256xf32>
    %29 = vector.shape_cast %26 : vector<8x256xf32> to vector<1x8x256xf32>
    tpu.vector_store %arg10[%c0_20, %c0_21, %c0_22], %29 {strides = array<i32>} : memref<1x8x256xf32, #tpu.memory_space<vmem>>, vector<1x8x256xf32>,
    %c0_23 = arith.constant 0 : index
    %c0_24 = arith.constant 0 : index
    %30 = vector.load %arg11[%c0_23, %c0_24] : memref<8x256xf32, #tpu.memory_space<vmem>>, vector<8x256xf32>
    %31 = arith.mulf %23, %23 : vector<8x256xf32>
    %32 = arith.addf %30, %31 : vector<8x256xf32>
    %c0_25 = arith.constant 0 : index
    %c0_26 = arith.constant 0 : index
    %33 = vector.load %arg11[%c0_25, %c0_26] : memref<8x256xf32, #tpu.memory_space<vmem>>, vector<8x256xf32>
    tpu.vector_store %arg11[%c0_25, %c0_26], %32 {strides = array<i32>} : memref<8x256xf32, #tpu.memory_space<vmem>>, vector<8x256xf32>,
    %c0_i32_27 = arith.constant 0 : i32
    %34 = arith.cmpi eq, %arg1, %c0_i32_27 : i32
    %35 = arith.extui %34 : i1 to i32
    %c0_i32_28 = arith.constant 0 : i32
    %36 = arith.cmpi ne, %35, %c0_i32_28 : i32
    scf.if %36 {
      %c0_29 = arith.constant 0 : index
      %c0_30 = arith.constant 0 : index
      %c0_31 = arith.constant 0 : index
      %37 = vector.load %arg10[%c0_29, %c0_30, %c0_31] : memref<1x8x256xf32, #tpu.memory_space<vmem>>, vector<1x8x256xf32>
      %cst_32 = arith.constant dense<0xFF800000> : vector<1x8xf32>
      %38 = vector.multi_reduction <maximumf>, %37, %cst_32 [2] : vector<1x8x256xf32> to vector<1x8xf32>
      %39 = vector.shape_cast %38 : vector<1x8xf32> to vector<1x1x8xf32>
      %c0_33 = arith.constant 0 : index
      %c0_34 = arith.constant 0 : index
      %c0_35 = arith.constant 0 : index
      %40 = vector.load %arg8[%c0_33, %c0_34, %c0_35] : memref<1x1x8xf32, #tpu.memory_space<vmem>>, vector<1x1x8xf32>
      tpu.vector_store %arg8[%c0_33, %c0_34, %c0_35], %39 {strides = array<i32>} : memref<1x1x8xf32, #tpu.memory_space<vmem>>, vector<1x1x8xf32>,
      %c0_36 = arith.constant 0 : index
      %c0_37 = arith.constant 0 : index
      %41 = vector.load %arg11[%c0_36, %c0_37] : memref<8x256xf32, #tpu.memory_space<vmem>>, vector<8x256xf32>
      %42 = vector.shape_cast %41 : vector<8x256xf32> to vector<1x8x256xf32>
      %cst_38 = arith.constant dense<0.000000e+00> : vector<1xf32>
      %43 = vector.multi_reduction <add>, %42, %cst_38 [1, 2] : vector<1x8x256xf32> to vector<1xf32>
      %44 = vector.shape_cast %43 : vector<1xf32> to vector<1x1x1xf32>
      %45 = vector.extract %44[0, 0, 0] : f32 from vector<1x1x1xf32>
      %46 = vector.broadcast %45 : f32 to vector<1x1x1xf32>
      %c0_39 = arith.constant 0 : index
      %c0_40 = arith.constant 0 : index
      %c0_41 = arith.constant 0 : index
      %47 = vector.load %arg9[%c0_39, %c0_40, %c0_41] : memref<1x1x1xf32, #tpu.memory_space<vmem>>, vector<1x1x1xf32>
      tpu.vector_store %arg9[%c0_39, %c0_40, %c0_41], %46 {strides = array<i32>} : memref<1x1x1xf32, #tpu.memory_space<vmem>>, vector<1x1x1xf32>,
    } else {
    }
    return
  }
  func.func @transform_0(%arg0: i32, %arg1: i32) -> (i32, i32, i32) {
    %c0_i32 = arith.constant 0 : i32
    %c0_i32_0 = arith.constant 0 : i32
    return %arg0, %c0_i32, %arg1 : i32, i32, i32
  }
  func.func @transform_1(%arg0: i32, %arg1: i32) -> (i32, i32, i32) {
    %c0_i32 = arith.constant 0 : i32
    %c0_i32_0 = arith.constant 0 : i32
    return %arg0, %c0_i32, %arg1 : i32, i32, i32
  }
  func.func @transform_2(%arg0: i32, %arg1: i32) -> (i32, i32) {
    %c0_i32 = arith.constant 0 : i32
    %c0_i32_0 = arith.constant 0 : i32
    %c0_i32_1 = arith.constant 0 : i32
    return %c0_i32, %c0_i32_0 : i32, i32
  }
  func.func @transform_3(%arg0: i32, %arg1: i32) -> (i32, i32) {
    %c0_i32 = arith.constant 0 : i32
    %c0_i32_0 = arith.constant 0 : i32
    %c0_i32_1 = arith.constant 0 : i32
    return %c0_i32, %c0_i32_0 : i32, i32
  }
  func.func @transform_4(%arg0: i32, %arg1: i32) -> (i32, i32) {
    %c0_i32 = arith.constant 0 : i32
    %c0_i32_0 = arith.constant 0 : i32
    %c0_i32_1 = arith.constant 0 : i32
    return %c0_i32, %c0_i32_0 : i32, i32
  }
  func.func @transform_5(%arg0: i32, %arg1: i32) -> (i32, i32) {
    %c0_i32 = arith.constant 0 : i32
    %c0_i32_0 = arith.constant 0 : i32
    %c0_i32_1 = arith.constant 0 : i32
    return %c0_i32, %c0_i32_0 : i32, i32
  }
  func.func @transform_6(%arg0: i32, %arg1: i32) -> (i32, i32, i32) {
    %c0_i32 = arith.constant 0 : i32
    %c0_i32_0 = arith.constant 0 : i32
    %c0_i32_1 = arith.constant 0 : i32
    return %arg0, %c0_i32, %c0_i32_0 : i32, i32, i32
  }
  func.func @transform_7(%arg0: i32, %arg1: i32) -> (i32, i32, i32) {
    %c0_i32 = arith.constant 0 : i32
    %c0_i32_0 = arith.constant 0 : i32
    %c0_i32_1 = arith.constant 0 : i32
    return %arg0, %c0_i32, %c0_i32_0 : i32, i32, i32
  }
}

</mosaic_0001>

<llo_original>
// kernel: lrn_forward.1
$region0: #{lrn_forward.1}
  #allocation0 [shape = 'u32[]', space=smem, size = 0x4, offset = 0x4, fixed_abs, tag = 'smem constant byte address 0x4 - core index']
  #allocation1 [shape = 'u32[72,128]{1,0:T(1,128)}', space=vmem, size = 0x9000, scoped, tag = 'internal scratch']
  #allocation2 [shape = 'f32[1,8,256]{2,1,0:T(8,128)}', space=vmem, size = 0x2000, scoped, tag = 'scratch operand']
  #allocation3 [shape = 'f32[8,256]{1,0:T(8,128)}', space=vmem, size = 0x2000, scoped, tag = 'scratch operand']
  %s0 = inlined_call_operand.vmem [shape: f32[2,8,256], index: 0, kind: input, shape index: {}]
  %s1 = inlined_call_operand.vmem [shape: f32[2,8,256], index: 1, kind: input, shape index: {}]
  %s2 = inlined_call_operand.vmem [shape: f32[16,8], index: 2, kind: input, shape index: {}]
  %s3 = inlined_call_operand.vmem [shape: f32[16,1], index: 3, kind: input, shape index: {}]
  %s4 = inlined_call_operand.vmem [shape: f32[8,8], index: 4, kind: input, shape index: {}]
  %s5 = inlined_call_operand.vmem [shape: f32[8,1], index: 5, kind: input, shape index: {}]
  %s6 = inlined_call_operand.vmem [shape: f32[2,1,8], index: 6, kind: output, shape index: {0}]
  %s7 = inlined_call_operand.vmem [shape: f32[2,1,1], index: 7, kind: output, shape index: {1}]
  %8 = xla_tuple %s6, %s7
  %s9 = sld [smem:[#allocation0]]
  $region73: #{lrn_forward.1} parent=0
    _
  %s11 = ssub.s32 1, %s9
  %s12 = scalar_select 0, %s11, %s9
  loop: start=0, step=1, limit=4
  $region2: #{lrn_forward.1} parent=0 // loop_pre_header
    _
  $region3: #{lrn_forward.1} parent=0 // loop_header
    %s14 = sphi 0, %s18
    %p15 = scmp.ge.s32.totalorder %s14, 4
    %s21 = sphi 0, %s33
    %s22 = sphi 0, %s29
    %s23 = sphi 0, %s21
    %s24 = sphi 0, %s22
    %s25 = sphi 0, %s23
    %s26 = sphi 0, %s24
    %s38 = sphi 0, %s40
    %s41 = sphi 0, %s38
    %s42 = sphi 0, %s41
    %s58 = sphi 0, %s42
    %s66 = sphi 0, %s68
    %s69 = sphi 0, %s66
    %s70 = sphi 0, %s69
    %s86 = sphi 0, %s70
    %s90 = sphi 0, %s90
    %s92 = sphi 0, %s90
    %s93 = sphi 0, %s92
    %s107 = sphi 0, %s93
    %s111 = sphi 0, %s111
    %s113 = sphi 0, %s111
    %s114 = sphi 0, %s113
    %s128 = sphi 0, %s114
    %s132 = sphi 0, %s132
    %s134 = sphi 0, %s132
    %s135 = sphi 0, %s134
    %s149 = sphi 0, %s135
    %s153 = sphi 0, %s153
    %s155 = sphi 0, %s153
    %s156 = sphi 0, %s155
    %s170 = sphi 0, %s156
    %s176 = sphi 0, %s178
    %s179 = sphi 0, %s176
    %s180 = sphi 0, %s179
    %s196 = sphi 0, %s180
    %s202 = sphi 0, %s204
    %s205 = sphi 0, %s202
    %s206 = sphi 0, %s205
    %s222 = sphi 0, %s206
  $region4: #{lrn_forward.1} parent=0 // loop_header_branch
    %17 = sbr.rel (%p15) target = $region8
  $region5: #{lrn_forward.1} parent=0 // loop_body
    %s19 = ssub.s32 %s14, 1
    %s20 = ssub.s32 %s14, 2
    %s27 = sadd.s32 1, %s22
    %p28 = scmp.ge.s32.totalorder %s27, 1
    %s29 = scalar_select %p28, 0, %s27
    %s30 = sadd.s32 1, %s21
    %s31 = scalar_select %p28, %s30, %s21
    %p32 = scmp.ge.s32.totalorder %s31, 2
    %s33 = scalar_select %p32, 0, %s31
    %s34 = ssub.s32 %s21, %s33
    %s35 = ssub.s32 %s22, %s29
    %s36 = sor.u32 %s34, %s35
    %p37 = scmp.eq.s32.totalorder %s36, 0
    %s39 = sadd.s32 %s38, 1
    %s40 = scalar_select %p37, %s38, %s39
    %p43 = pneg %p37
    %p44 = scmp.eq.s32.totalorder %s14, 1
    %p45 = por %p43, %p44
    %p46 = scmp.ne.s32.totalorder %s38, %s41
    %p47 = scmp.eq.s32.totalorder %s14, 0
    %p48 = por %p46, %p47
    %p49 = scmp.ne.s32.totalorder %s38, %s41
    %p50 = scmp.eq.s32.totalorder %s19, 1
    %p51 = por %p49, %p50
    %p52 = scmp.ne.s32.totalorder %s41, %s42
    %p53 = scmp.eq.s32.totalorder %s19, 0
    %p54 = por %p52, %p53
    %p55 = scmp.ne.s32.totalorder %s41, %s42
    %p56 = scmp.eq.s32.totalorder %s20, 1
    %p57 = por %p55, %p56
    %p59 = scmp.ne.s32.totalorder %s42, %s58
    %p60 = scmp.eq.s32.totalorder %s20, 0
    %p61 = por %p59, %p60
    %s62 = ssub.s32 %s21, %s33
    %s63 = ssub.s32 %s22, %s29
    %s64 = sor.u32 %s62, %s63
    %p65 = scmp.eq.s32.totalorder %s64, 0
    %s67 = sadd.s32 %s66, 1
    %s68 = scalar_select %p65, %s66, %s67
    %p71 = pneg %p65
    %p72 = scmp.eq.s32.totalorder %s14, 1
    %p73 = por %p71, %p72
    %p74 = scmp.ne.s32.totalorder %s66, %s69
    %p75 = scmp.eq.s32.totalorder %s14, 0
    %p76 = por %p74, %p75
    %p77 = scmp.ne.s32.totalorder %s66, %s69
    %p78 = scmp.eq.s32.totalorder %s19, 1
    %p79 = por %p77, %p78
    %p80 = scmp.ne.s32.totalorder %s69, %s70
    %p81 = scmp.eq.s32.totalorder %s19, 0
    %p82 = por %p80, %p81
    %p83 = scmp.ne.s32.totalorder %s69, %s70
    %p84 = scmp.eq.s32.totalorder %s20, 1
    %p85 = por %p83, %p84
    %p87 = scmp.ne.s32.totalorder %s70, %s86
    %p88 = scmp.eq.s32.totalorder %s20, 0
    %p89 = por %p87, %p88
    %s91 = sadd.s32 %s90, 1
    %p94 = scmp.eq.s32.totalorder %s14, 1
    %p95 = scmp.ne.s32.totalorder %s90, %s92
    %p96 = scmp.eq.s32.totalorder %s14, 0
    %p97 = por %p95, %p96
    %p98 = scmp.ne.s32.totalorder %s90, %s92
    %p99 = scmp.eq.s32.totalorder %s19, 1
    %p100 = por %p98, %p99
    %p101 = scmp.ne.s32.totalorder %s92, %s93
    %p102 = scmp.eq.s32.totalorder %s19, 0
    %p103 = por %p101, %p102
    %p104 = scmp.ne.s32.totalorder %s92, %s93
    %p105 = scmp.eq.s32.totalorder %s20, 1
    %p106 = por %p104, %p105
    %p108 = scmp.ne.s32.totalorder %s93, %s107
    %p109 = scmp.eq.s32.totalorder %s20, 0
    %p110 = por %p108, %p109
    %s112 = sadd.s32 %s111, 1
    %p115 = scmp.eq.s32.totalorder %s14, 1
    %p116 = scmp.ne.s32.totalorder %s111, %s113
    %p117 = scmp.eq.s32.totalorder %s14, 0
    %p118 = por %p116, %p117
    %p119 = scmp.ne.s32.totalorder %s111, %s113
    %p120 = scmp.eq.s32.totalorder %s19, 1
    %p121 = por %p119, %p120
    %p122 = scmp.ne.s32.totalorder %s113, %s114
    %p123 = scmp.eq.s32.totalorder %s19, 0
    %p124 = por %p122, %p123
    %p125 = scmp.ne.s32.totalorder %s113, %s114
    %p126 = scmp.eq.s32.totalorder %s20, 1
    %p127 = por %p125, %p126
    %p129 = scmp.ne.s32.totalorder %s114, %s128
    %p130 = scmp.eq.s32.totalorder %s20, 0
    %p131 = por %p129, %p130
    %s133 = sadd.s32 %s132, 1
    %p136 = scmp.eq.s32.totalorder %s14, 1
    %p137 = scmp.ne.s32.totalorder %s132, %s134
    %p138 = scmp.eq.s32.totalorder %s14, 0
    %p139 = por %p137, %p138
    %p140 = scmp.ne.s32.totalorder %s132, %s134
    %p141 = scmp.eq.s32.totalorder %s19, 1
    %p142 = por %p140, %p141
    %p143 = scmp.ne.s32.totalorder %s134, %s135
    %p144 = scmp.eq.s32.totalorder %s19, 0
    %p145 = por %p143, %p144
    %p146 = scmp.ne.s32.totalorder %s134, %s135
    %p147 = scmp.eq.s32.totalorder %s20, 1
    %p148 = por %p146, %p147
    %p150 = scmp.ne.s32.totalorder %s135, %s149
    %p151 = scmp.eq.s32.totalorder %s20, 0
    %p152 = por %p150, %p151
    %s154 = sadd.s32 %s153, 1
    %p157 = scmp.eq.s32.totalorder %s14, 1
    %p158 = scmp.ne.s32.totalorder %s153, %s155
    %p159 = scmp.eq.s32.totalorder %s14, 0
    %p160 = por %p158, %p159
    %p161 = scmp.ne.s32.totalorder %s153, %s155
    %p162 = scmp.eq.s32.totalorder %s19, 1
    %p163 = por %p161, %p162
    %p164 = scmp.ne.s32.totalorder %s155, %s156
    %p165 = scmp.eq.s32.totalorder %s19, 0
    %p166 = por %p164, %p165
    %p167 = scmp.ne.s32.totalorder %s155, %s156
    %p168 = scmp.eq.s32.totalorder %s20, 1
    %p169 = por %p167, %p168
    %p171 = scmp.ne.s32.totalorder %s156, %s170
    %p172 = scmp.eq.s32.totalorder %s20, 0
    %p173 = por %p171, %p172
    %s174 = ssub.s32 %s21, %s33
    %p175 = scmp.eq.s32.totalorder %s174, 0
    %s177 = sadd.s32 %s176, 1
    %s178 = scalar_select %p175, %s176, %s177
    %p181 = pneg %p175
    %p182 = scmp.eq.s32.totalorder %s14, 1
    %p183 = por %p181, %p182
    %p184 = scmp.ne.s32.totalorder %s176, %s179
    %p185 = scmp.eq.s32.totalorder %s14, 0
    %p186 = por %p184, %p185
    %p187 = scmp.ne.s32.totalorder %s176, %s179
    %p188 = scmp.eq.s32.totalorder %s19, 1
    %p189 = por %p187, %p188
    %p190 = scmp.ne.s32.totalorder %s179, %s180
    %p191 = scmp.eq.s32.totalorder %s19, 0
    %p192 = por %p190, %p191
    %p193 = scmp.ne.s32.totalorder %s179, %s180
    %p194 = scmp.eq.s32.totalorder %s20, 1
    %p195 = por %p193, %p194
    %p197 = scmp.ne.s32.totalorder %s180, %s196
    %p198 = scmp.eq.s32.totalorder %s20, 0
    %p199 = por %p197, %p198
    %s200 = ssub.s32 %s21, %s33
    %p201 = scmp.eq.s32.totalorder %s200, 0
    %s203 = sadd.s32 %s202, 1
    %s204 = scalar_select %p201, %s202, %s203
    %p207 = pneg %p201
    %p208 = scmp.eq.s32.totalorder %s14, 1
    %p209 = por %p207, %p208
    %p210 = scmp.ne.s32.totalorder %s202, %s205
    %p211 = scmp.eq.s32.totalorder %s14, 0
    %p212 = por %p210, %p211
    %p213 = scmp.ne.s32.totalorder %s202, %s205
    %p214 = scmp.eq.s32.totalorder %s19, 1
    %p215 = por %p213, %p214
    %p216 = scmp.ne.s32.totalorder %s205, %s206
    %p217 = scmp.eq.s32.totalorder %s19, 0
    %p218 = por %p216, %p217
    %p219 = scmp.ne.s32.totalorder %s205, %s206
    %p220 = scmp.eq.s32.totalorder %s20, 1
    %p221 = por %p219, %p220
    %p223 = scmp.ne.s32.totalorder %s206, %s222
    %p224 = scmp.eq.s32.totalorder %s20, 0
    %p225 = por %p223, %p224
    %p226 = scmp.le.s32.totalorder 1, %s14
    %p227 = scmp.lt.s32.totalorder %s14, 3
    %p228 = pnand %p226, %p227
    %p229 = pneg %p228
    // Predicated region
    $region9: #{lrn_forward.1} parent=5 // pred_check
      _
    $region10: #{lrn_forward.1} parent=5 // pred_check_branch
      %231 = sbr.rel (%p228) target = $region12
    $region11: #{lrn_forward.1} parent=5 // pred_region
      %s232 = ssub.s32 %s14, 1
      // Predicated region
      $region13: #{lrn_forward.1} parent=11 // pred_check
        %p233 = pneg %p103
      $region14: #{lrn_forward.1} parent=11 // pred_check_branch
        %235 = sbr.rel (%p233) target = $region16
      $region15: #{lrn_forward.1} parent=11 // pred_region
        _
      $region16: #{lrn_forward.1} parent=11 // pred_fallthru
        _
      // Predicated region
      $region17: #{lrn_forward.1} parent=11 // pred_check
        %p236 = pneg %p124
      $region18: #{lrn_forward.1} parent=11 // pred_check_branch
        %238 = sbr.rel (%p236) target = $region20
      $region19: #{lrn_forward.1} parent=11 // pred_region
        _
      $region20: #{lrn_forward.1} parent=11 // pred_fallthru
        _
      // Predicated region
      $region21: #{lrn_forward.1} parent=11 // pred_check
        %p239 = pneg %p145
      $region22: #{lrn_forward.1} parent=11 // pred_check_branch
        %241 = sbr.rel (%p239) target = $region24
      $region23: #{lrn_forward.1} parent=11 // pred_region
        _
      $region24: #{lrn_forward.1} parent=11 // pred_fallthru
        _
      // Predicated region
      $region25: #{lrn_forward.1} parent=11 // pred_check
        %p242 = pneg %p166
      $region26: #{lrn_forward.1} parent=11 // pred_check_branch
        %244 = sbr.rel (%p242) target = $region28
      $region27: #{lrn_forward.1} parent=11 // pred_region
        _
      $region28: #{lrn_forward.1} parent=11 // pred_fallthru
        _
    $region12: #{lrn_forward.1} parent=5 // pred_fallthru
      _
    %p245 = scmp.lt.s32.totalorder %s14, 2
    // Predicated region
    $region29: #{lrn_forward.1} parent=5 // pred_check
      %p246 = pneg %p245
    $region30: #{lrn_forward.1} parent=5 // pred_check_branch
      %248 = sbr.rel (%p246) target = $region32
    $region31: #{lrn_forward.1} parent=5 // pred_region
      // Predicated region
      $region33: #{lrn_forward.1} parent=31 // pred_check
        %p249 = pneg %p48
      $region34: #{lrn_forward.1} parent=31 // pred_check_branch
        %251 = sbr.rel (%p249) target = $region36
      $region35: #{lrn_forward.1} parent=31 // pred_region
        %s252 = smul.u32 2, %s22
        %p253 = scmp.lt.s32.totalorder %s21, 1
        %s254 = scalar_select %p253, %s21, 1
        %p255 = scmp.lt.s32.totalorder %s252, 1
        %s256 = scalar_select %p255, %s252, 1
        %s257 = smul.addr %s254, 2
        %s258 = sadd.s32 %s256, %s257
        %s259 = smul.addr %s258, 8
        %s260 = scalar_lea.vmem %s0, %s259
        %s261 = smul.u32 2, %s22
      $region36: #{lrn_forward.1} parent=31 // pred_fallthru
        _
      // Predicated region
      $region37: #{lrn_forward.1} parent=31 // pred_check
        %p262 = pneg %p76
      $region38: #{lrn_forward.1} parent=31 // pred_check_branch
        %264 = sbr.rel (%p262) target = $region40
      $region39: #{lrn_forward.1} parent=31 // pred_region
        %s265 = smul.u32 2, %s22
        %p266 = scmp.lt.s32.totalorder %s21, 1
        %s267 = scalar_select %p266, %s21, 1
        %p268 = scmp.lt.s32.totalorder %s265, 1
        %s269 = scalar_select %p268, %s265, 1
        %s270 = smul.addr %s267, 2
        %s271 = sadd.s32 %s269, %s270
        %s272 = smul.addr %s271, 8
        %s273 = scalar_lea.vmem %s1, %s272
        %s274 = smul.u32 2, %s22
      $region40: #{lrn_forward.1} parent=31 // pred_fallthru
        _
    $region32: #{lrn_forward.1} parent=5 // pred_fallthru
      _
    %p275 = scmp.le.s32.totalorder 1, %s14
    %p276 = scmp.lt.s32.totalorder %s14, 3
    %p277 = pnand %p275, %p276
    %p278 = pneg %p277
    // Predicated region
    $region41: #{lrn_forward.1} parent=5 // pred_check
      _
    $region42: #{lrn_forward.1} parent=5 // pred_check_branch
      %280 = sbr.rel (%p277) target = $region44
    $region43: #{lrn_forward.1} parent=5 // pred_region
      %s281 = ssub.s32 %s14, 1
      %s282 = smul.u32 2, %s24
      %p283 = scmp.lt.s32.totalorder %s23, 1
      %s284 = scalar_select %p283, %s23, 1
      %p285 = scmp.lt.s32.totalorder %s282, 1
      %s286 = scalar_select %p285, %s282, 1
      %s287 = smul.addr %s284, 2
      %s288 = sadd.s32 %s286, %s287
      %s289 = smul.addr %s288, 8
      %s290 = scalar_lea.vmem %s0, %s289
      %p291 = pneg %p54
      %p292 = pneg %p51
      %s293 = smul.u32 2, %s24
      %p294 = scmp.lt.s32.totalorder %s23, 1
      %s295 = scalar_select %p294, %s23, 1
      %p296 = scmp.lt.s32.totalorder %s293, 1
      %s297 = scalar_select %p296, %s293, 1
      %s298 = smul.addr %s295, 2
      %s299 = sadd.s32 %s297, %s298
      %s300 = smul.addr %s299, 8
      %s301 = scalar_lea.vmem %s1, %s300
      %p302 = pneg %p82
      %p303 = pneg %p79
      %p304 = pneg %p103
      %p305 = pneg %p100
      %p306 = pneg %p124
      %p307 = pneg %p121
      %p308 = pneg %p145
      %p309 = pneg %p142
      %p310 = pneg %p166
      %p311 = pneg %p163
      %p312 = pneg %p192
      %p313 = pneg %p189
      %p314 = scmp.lt.s32.totalorder %s23, 1
      %s315 = scalar_select %p314, %s23, 1
      %s316 = scalar_lea.vmem %s6, %s315
      %p317 = pneg %p218
      %p318 = pneg %p215
      %p319 = scmp.lt.s32.totalorder %s23, 1
      %s320 = scalar_select %p319, %s23, 1
      %s321 = scalar_lea.vmem %s7, %s320
      %s322 = smul.u32 2, %s24
      %p323 = scmp.lt.s32.totalorder %s23, 1
      %s324 = scalar_select %p323, %s23, 1
      %p325 = scmp.lt.s32.totalorder %s322, 1
      %s326 = scalar_select %p325, %s322, 1
      %s327 = smul.addr %s324, 2
      %s328 = sadd.s32 %s326, %s327
      %s329 = smul.addr %s328, 8
      %s330 = scalar_lea.vmem %s0, %s329
      %s331 = smul.u32 2, %s24
      %s332 = smul.u32 2, %s24
      %p333 = scmp.lt.s32.totalorder %s23, 1
      %s334 = scalar_select %p333, %s23, 1
      %p335 = scmp.lt.s32.totalorder %s332, 1
      %s336 = scalar_select %p335, %s332, 1
      %s337 = smul.addr %s334, 2
      %s338 = sadd.s32 %s336, %s337
      %s339 = smul.addr %s338, 8
      %s340 = scalar_lea.vmem %s1, %s339
      %s341 = smul.u32 2, %s24
      %p342 = scmp.lt.s32.totalorder %s23, 1
      %s343 = scalar_select %p342, %s23, 1
      %s344 = scalar_lea.vmem %s6, %s343
      %p345 = scmp.lt.s32.totalorder %s23, 1
      %s346 = scalar_select %p345, %s23, 1
      %s347 = scalar_lea.vmem %s7, %s346
      %p348 = scmp.eq.s32.totalorder %s24, 0
      // Predicated region
      $region45: #{lrn_forward.1} parent=43 // pred_check
        %p349 = pneg %p348
      $region46: #{lrn_forward.1} parent=43 // pred_check_branch
        %351 = sbr.rel (%p349) target = $region48
      $region47: #{lrn_forward.1} parent=43 // pred_region
        %352 = vst [vmem:[#allocation2] sm:$0xff] 0.0
        %353 = vst [vmem:[#allocation2 + $0x8] sm:$0xff] 0.0
        %354 = vst [vmem:[#allocation3] sm:$0xff] 0.0
        %355 = vst [vmem:[#allocation3 + $0x8] sm:$0xff] 0.0
      $region48: #{lrn_forward.1} parent=43 // pred_fallthru
        _
      %v356 = vld [vmem:[%s2] sm:$0xff]
      %v357 = vld [vmem:[%s2 + $0x8] sm:$0xff]
      %v358 = vld [vmem:[%s3] sm:$0xff]
      %v359 = vld [vmem:[%s3 + $0x8] sm:$0xff]
      %v360 = vld [vmem:[%s4] sm:$0xff]
      %v361 = vld [vmem:[%s5] sm:$0xff]
      %v362 = vld [vmem:[%s330] sm:$0xff]
      %v363 = vld [vmem:[%s330 + $0x8] sm:$0xff]
      %v364 = vld [vmem:[%s340] sm:$0xff]
      %v365 = vld [vmem:[%s340 + $0x8] sm:$0xff]
      %367 = vset.pattern.permute.xlu0 0
      %368 = vperm.xlu0 %367, %v358
      %v369 = vpop.permute.xlu0 %368
      %372 = vset.pattern.permute.xlu0 0
      %373 = vperm.xlu0 %372, %v359
      %v374 = vpop.permute.xlu0 %373
      %vm376 = vcmask 64512
      %v378 = vsel %vm376, %v356, 0
      %v381 = vsel %vm376, %v357, 0
      %383 = vmatpush.msra.mxu0 0.0
      %384 = vmatpush.msra.mxu0 0.0
      %385 = vmatpush.msra.mxu0 0.0
      %386 = vmatpush.msra.mxu0 0.0
      %387 = vmatpush.msra.mxu0 0.0
      %388 = vmatpush.msra.mxu0 0.0
      %389 = vmatpush.msra.mxu0 0.0
      %390 = vmatpush.msra.mxu0 0.0
      %391 = vmatpush.msra.mxu0 0.0
      %392 = vmatpush.msra.mxu0 0.0
      %393 = vmatpush.msra.mxu0 0.0
      %394 = vmatpush.msra.mxu0 0.0
      %395 = vmatpush.msra.mxu0 0.0
      %396 = vmatpush.msra.mxu0 0.0
      %397 = vmatpush.msra.mxu0 0.0
      %398 = vmatpush.msra.mxu0 %v362
      %399 = vmatmul.f32.gmra.mxu0 %v378
      %v400 = vpop.f32.mrf.mxu0
      %v401 = vadd.f32 %v369, %v400
      %402 = vmatmul.f32.gmra.mxu0 %v381
      %v403 = vpop.f32.mrf.mxu0
      %v404 = vadd.f32 %v374, %v403
      %405 = vdwg.mxu0
      %406 = vmatpush.msra.mxu0 0.0
      %407 = vmatpush.msra.mxu0 0.0
      %408 = vmatpush.msra.mxu0 0.0
      %409 = vmatpush.msra.mxu0 0.0
      %410 = vmatpush.msra.mxu0 0.0
      %411 = vmatpush.msra.mxu0 0.0
      %412 = vmatpush.msra.mxu0 0.0
      %413 = vmatpush.msra.mxu0 0.0
      %414 = vmatpush.msra.mxu0 0.0
      %415 = vmatpush.msra.mxu0 0.0
      %416 = vmatpush.msra.mxu0 0.0
      %417 = vmatpush.msra.mxu0 0.0
      %418 = vmatpush.msra.mxu0 0.0
      %419 = vmatpush.msra.mxu0 0.0
      %420 = vmatpush.msra.mxu0 0.0
      %421 = vmatpush.msra.mxu0 %v363
      %422 = vmatmul.f32.gmra.mxu0 %v378
      %v423 = vpop.f32.mrf.mxu0
      %v424 = vadd.f32 %v369, %v423
      %425 = vmatmul.f32.gmra.mxu0 %v381
      %v426 = vpop.f32.mrf.mxu0
      %v427 = vadd.f32 %v374, %v426
      %428 = vdwg.mxu0
      %v429 = vmax.f32 %v401, 0.0
      %v430 = vmax.f32 %v424, 0.0
      %v431 = vmax.f32 %v404, 0.0
      %v432 = vmax.f32 %v427, 0.0
      %434 = vset.pattern.permute.xlu0 0
      %435 = vperm.xlu0 %434, %v361
      %v436 = vpop.permute.xlu0 %435
      %v439 = vsel %vm376, %v360, 0
      %441 = vmatpush.msra.mxu0 0.0
      %442 = vmatpush.msra.mxu0 0.0
      %443 = vmatpush.msra.mxu0 0.0
      %444 = vmatpush.msra.mxu0 0.0
      %445 = vmatpush.msra.mxu0 0.0
      %446 = vmatpush.msra.mxu0 0.0
      %447 = vmatpush.msra.mxu0 0.0
      %448 = vmatpush.msra.mxu0 0.0
      %449 = vmatpush.msra.mxu0 0.0
      %450 = vmatpush.msra.mxu0 0.0
      %451 = vmatpush.msra.mxu0 0.0
      %452 = vmatpush.msra.mxu0 0.0
      %453 = vmatpush.msra.mxu0 0.0
      %454 = vmatpush.msra.mxu0 0.0
      %455 = vmatpush.msra.mxu0 0.0
      %456 = vmatpush.msra.mxu0 %v364
      %457 = vmatmul.f32.gmra.mxu0 %v439
      %v458 = vpop.f32.mrf.mxu0
      %v459 = vadd.f32 %v436, %v458
      %460 = vdwg.mxu0
      %461 = vmatpush.msra.mxu0 0.0
      %462 = vmatpush.msra.mxu0 0.0
      %463 = vmatpush.msra.mxu0 0.0
      %464 = vmatpush.msra.mxu0 0.0
      %465 = vmatpush.msra.mxu0 0.0
      %466 = vmatpush.msra.mxu0 0.0
      %467 = vmatpush.msra.mxu0 0.0
      %468 = vmatpush.msra.mxu0 0.0
      %469 = vmatpush.msra.mxu0 0.0
      %470 = vmatpush.msra.mxu0 0.0
      %471 = vmatpush.msra.mxu0 0.0
      %472 = vmatpush.msra.mxu0 0.0
      %473 = vmatpush.msra.mxu0 0.0
      %474 = vmatpush.msra.mxu0 0.0
      %475 = vmatpush.msra.mxu0 0.0
      %476 = vmatpush.msra.mxu0 %v365
      %477 = vmatmul.f32.gmra.mxu0 %v439
      %v478 = vpop.f32.mrf.mxu0
      %v479 = vadd.f32 %v436, %v478
      %480 = vdwg.mxu0
      %v481 = vmax.f32 %v459, 0.0
      %v482 = vmax.f32 %v479, 0.0
      %v483 = vsub.f32 %v429, %v481
      %v484 = vsub.f32 %v430, %v482
      %v485 = vld [vmem:[#allocation2] sm:$0xff]
      %v486 = vld [vmem:[#allocation2 + $0x8] sm:$0xff]
      %v487 = vmax.f32 %v485, %v431
      %v488 = vmax.f32 %v486, %v432
      %489 = vst [vmem:[#allocation2] sm:$0xff] %v487
      %490 = vst [vmem:[#allocation2 + $0x8] sm:$0xff] %v488
      %v491 = vld [vmem:[#allocation3] sm:$0xff]
      %v492 = vld [vmem:[#allocation3 + $0x8] sm:$0xff]
      %v493 = vmul.f32 %v483, %v483
      %v494 = vmul.f32 %v484, %v484
      %v495 = vadd.f32 %v491, %v493
      %v496 = vadd.f32 %v492, %v494
      %497 = vst [vmem:[#allocation3] sm:$0xff] %v495
      %498 = vst [vmem:[#allocation3 + $0x8] sm:$0xff] %v496
      // Predicated region
      $region49: #{lrn_forward.1} parent=43 // pred_check
        %p499 = pneg %p348
      $region50: #{lrn_forward.1} parent=43 // pred_check_branch
        %501 = sbr.rel (%p499) target = $region52
      $region51: #{lrn_forward.1} parent=43 // pred_region
        %v502 = vld [vmem:[#allocation2] sm:$0xff]
        %v503 = vld [vmem:[#allocation2 + $0x8] sm:$0xff]
        %v504 = vmax.f32 %v502, %v503
        %505 = vmax.xlane.f32.xlu0 %v504
        %v506 = vpop.xlane.xlu0 %505
        %v508 = vlaneseq
        %v509 = vand.u32 %v508, 127
        %v510 = vperm.slane %v506, %v509
        %vm512 = vcmask 57344
        %513 = vst.msk [vmem:[%s344] sm:$0x1] %vm512, %v510
        %v514 = vld [vmem:[#allocation3] sm:$0xff]
        %v515 = vld [vmem:[#allocation3 + $0x8] sm:$0xff]
        %v516 = vadd.f32 %v514, %v515
        %517 = vadd.xlane.f32.xlu0 %v516
        %v518 = vpop.xlane.xlu0 %517
        %v519 = vrot.slane %v518, 4
        %v520 = vadd.f32 %v518, %v519
        %v521 = vrot.slane %v520, 2
        %v522 = vadd.f32 %v520, %v521
        %v523 = vrot.slane %v522, 1
        %v524 = vadd.f32 %v522, %v523
        %s525 = vtos %v524
        %v526 = vstv %s525
        %vm527 = vcmask 0
        %528 = vst.msk [vmem:[%s347] sm:$0x1] %vm527, %v526
      $region52: #{lrn_forward.1} parent=43 // pred_fallthru
        _
      %p529 = scmp.lt.s32.totalorder %s23, 1
      %s530 = scalar_select %p529, %s23, 1
      %s531 = scalar_lea.vmem %s6, %s530
      %p532 = scmp.lt.s32.totalorder %s23, 1
      %s533 = scalar_select %p532, %s23, 1
      %s534 = scalar_lea.vmem %s7, %s533
      // Predicated region
      $region53: #{lrn_forward.1} parent=43 // pred_check
        %p535 = pneg %p189
      $region54: #{lrn_forward.1} parent=43 // pred_check_branch
        %537 = sbr.rel (%p535) target = $region56
      $region55: #{lrn_forward.1} parent=43 // pred_region
        _
      $region56: #{lrn_forward.1} parent=43 // pred_fallthru
        _
      // Predicated region
      $region57: #{lrn_forward.1} parent=43 // pred_check
        %p538 = pneg %p215
      $region58: #{lrn_forward.1} parent=43 // pred_check_branch
        %540 = sbr.rel (%p538) target = $region60
      $region59: #{lrn_forward.1} parent=43 // pred_region
        _
      $region60: #{lrn_forward.1} parent=43 // pred_fallthru
        _
    $region44: #{lrn_forward.1} parent=5 // pred_fallthru
      _
    %p541 = scmp.le.s32.totalorder 2, %s14
    // Predicated region
    $region61: #{lrn_forward.1} parent=5 // pred_check
      %p542 = pneg %p541
    $region62: #{lrn_forward.1} parent=5 // pred_check_branch
      %544 = sbr.rel (%p542) target = $region64
    $region63: #{lrn_forward.1} parent=5 // pred_region
      %s545 = ssub.s32 %s14, 2
      // Predicated region
      $region65: #{lrn_forward.1} parent=63 // pred_check
        %p546 = pneg %p195
      $region66: #{lrn_forward.1} parent=63 // pred_check_branch
        %548 = sbr.rel (%p546) target = $region68
      $region67: #{lrn_forward.1} parent=63 // pred_region
        %p549 = scmp.lt.s32.totalorder %s25, 1
        %s550 = scalar_select %p549, %s25, 1
        %s551 = scalar_lea.vmem %s6, %s550
      $region68: #{lrn_forward.1} parent=63 // pred_fallthru
        _
      // Predicated region
      $region69: #{lrn_forward.1} parent=63 // pred_check
        %p552 = pneg %p221
      $region70: #{lrn_forward.1} parent=63 // pred_check_branch
        %554 = sbr.rel (%p552) target = $region72
      $region71: #{lrn_forward.1} parent=63 // pred_region
        %p555 = scmp.lt.s32.totalorder %s25, 1
        %s556 = scalar_select %p555, %s25, 1
        %s557 = scalar_lea.vmem %s7, %s556
      $region72: #{lrn_forward.1} parent=63 // pred_fallthru
        _
    $region64: #{lrn_forward.1} parent=5 // pred_fallthru
      _
  $region6: #{lrn_forward.1} parent=0 // loop_footer
    %s18 = sadd.s32 1, %s14
  $region7: #{lrn_forward.1} parent=0 // loop_footer_branch
    %13 = sbr.rel target = $region3
  $region8: #{lrn_forward.1} parent=0 // loop_exit
    _

</llo_original>
